<compile_context>
chip_gen: v7x
topology: tpu7x:2x2x1
jax: 0.10.0
libtpu: 0.0.40
codegen_flags: <defaults>
</compile_context>

<pallas_src>
import jax
import jax.numpy as jnp
from jax.experimental import pallas as pl
from jax.experimental.pallas import tpu as pltpu

# ---- module constants (from TexasAgent.py) ----------------------------------
ACTION_SIZE = 4
NUMBER_OF_AGENTS = 6
STATE_SIZE = (2 * 2 + 1 + 5 * 2 + 1 + 1
              + (NUMBER_OF_AGENTS - 1) * 1
              + (NUMBER_OF_AGENTS - 1) * 1
              + (NUMBER_OF_AGENTS - 1) * 1)          # = 32
HIDDEN = 256
BN_EPS = 1e-5

# lane-friendly padded dims
STATE_PAD = 128          # K dim of first matmul, padded to a full MXU tile
OUT_PAD = 128            # lane-dense output width (unmasked vst)


# ---- Pallas kernel -----------------------------------------------------------
def dqn_kernel(x_ref, w1_ref, w2_ref, w3_ref, w4_ref, bn_ref, b4_ref, o_ref):
    """Whole DQN forward for one (small) batch resident in VMEM.

    x_ref : [B, 128]  bf16   (state zero-padded 32->128)
    w1    : [128,256] bf16, w2/w3 : [256,256] bf16, w4 : [256,128] bf16
    bn    : [6, 256]  f32  rows = (g1, be1, g2, be2, g3, be3)
    b4    : [1, 128]  f32  (fc4 bias zero-padded 4->128)
    o_ref : [B, 128]  f32
    """

    def linear_bn_relu(h_bf16, w_ref, g, be):
        # Linear on the MXU (bf16 inputs, f32 accumulate).  No bias: a linear
        # bias is exactly cancelled by the BN mean subtraction.
        y = jnp.dot(h_bf16, w_ref[...], preferred_element_type=jnp.float32)
        # Single-pass batch stats (training-mode BatchNorm1d, biased variance).
        mean = jnp.mean(y, axis=0, keepdims=True)
        mean_sq = jnp.mean(y * y, axis=0, keepdims=True)
        var = mean_sq - mean * mean
        # Fold gamma / rsqrt / beta into one scale + shift.
        s = g * jax.lax.rsqrt(var + BN_EPS)
        shift = be - mean * s
        return jnp.maximum(y * s + shift, 0.0)

    bn = bn_ref[...]                                   # [6, 256] f32
    h = linear_bn_relu(x_ref[...], w1_ref, bn[0:1, :], bn[1:2, :])
    h = linear_bn_relu(h.astype(jnp.bfloat16), w2_ref, bn[2:3, :], bn[3:4, :])
    h = linear_bn_relu(h.astype(jnp.bfloat16), w3_ref, bn[4:5, :], bn[5:6, :])
    # Final linear (no BN / relu), lane-dense 128-wide output.
    o_ref[...] = (jnp.dot(h.astype(jnp.bfloat16), w4_ref[...],
                          preferred_element_type=jnp.float32) + b4_ref[...])


# ---- wrapper -----------------------------------------------------------------
def prepare_kernel_params(p):
    """One-time prep: pad, pack and cast the PyTorch-style params for the kernel."""
    w1_pad = (jnp.zeros((STATE_PAD, HIDDEN), jnp.float32)
              .at[:STATE_SIZE, :].set(p["w1"])).astype(jnp.bfloat16)
    w4_pad = (jnp.zeros((HIDDEN, OUT_PAD), jnp.float32)
              .at[:, :ACTION_SIZE].set(p["w4"])).astype(jnp.bfloat16)
    b4_pad = (jnp.zeros((1, OUT_PAD), jnp.float32)
              .at[:, :ACTION_SIZE].set(p["b4"]))
    # b1/b2/b3 intentionally dropped: exactly cancelled by BN mean subtraction.
    bn_pack = jnp.stack([p["g1"][0], p["be1"][0],
                         p["g2"][0], p["be2"][0],
                         p["g3"][0], p["be3"][0]], axis=0)        # [6, 256] f32
    return dict(w1=w1_pad,
                w2=p["w2"].astype(jnp.bfloat16),
                w3=p["w3"].astype(jnp.bfloat16),
                w4=w4_pad, bn=bn_pack, b4=b4_pad)


def dqn_forward(x, kp):
    """x: [B, STATE_SIZE] f32.  kp: output of prepare_kernel_params."""
    batch = x.shape[0]
    x_pad = (jnp.zeros((batch, STATE_PAD), jnp.float32)
             .at[:, :STATE_SIZE].set(x)).astype(jnp.bfloat16)
    vmem = pl.BlockSpec(memory_space=pltpu.MemorySpace.VMEM)
    out = pl.pallas_call(
        dqn_kernel,
        out_shape=jax.ShapeDtypeStruct((batch, OUT_PAD), jnp.float32),
        in_specs=[vmem] * 7,
        out_specs=vmem,
        compiler_params=pltpu.CompilerParams(vmem_limit_bytes=4 << 20),
    )(x_pad, kp["w1"], kp["w2"], kp["w3"], kp["w4"], kp["bn"], kp["b4"])
    return out[:, :ACTION_SIZE]


# ---- deterministic parameter init (mirrors PyTorch __init__) -----------------
def _kaiming_uniform_relu(key, fan_in, fan_out):
    # nn.init.kaiming_uniform_(w, nonlinearity='relu'):
    #   gain = sqrt(2), bound = gain * sqrt(3 / fan_in) = sqrt(6 / fan_in)
    bound = (6.0 / fan_in) ** 0.5
    # PyTorch weight is [out, in]; we store transposed [in, out] for x @ W.
    return jax.random.uniform(key, (fan_in, fan_out), jnp.float32, -bound, bound)


def init_params(key):
    k1, k2, k3, k4 = jax.random.split(key, 4)
    return {
        "w1": _kaiming_uniform_relu(k1, STATE_SIZE, HIDDEN),
        "b1": jnp.zeros((1, HIDDEN), jnp.float32),
        "g1": jnp.ones((1, HIDDEN), jnp.float32),
        "be1": jnp.zeros((1, HIDDEN), jnp.float32),
        "w2": _kaiming_uniform_relu(k2, HIDDEN, HIDDEN),
        "b2": jnp.zeros((1, HIDDEN), jnp.float32),
        "g2": jnp.ones((1, HIDDEN), jnp.float32),
        "be2": jnp.zeros((1, HIDDEN), jnp.float32),
        "w3": _kaiming_uniform_relu(k3, HIDDEN, HIDDEN),
        "b3": jnp.zeros((1, HIDDEN), jnp.float32),
        "g3": jnp.ones((1, HIDDEN), jnp.float32),
        "be3": jnp.zeros((1, HIDDEN), jnp.float32),
        "w4": _kaiming_uniform_relu(k4, HIDDEN, ACTION_SIZE),
        "b4": jnp.zeros((1, ACTION_SIZE), jnp.float32),
    }


# ---- pure-JAX reference (models the same bf16 weight/activation quantization) -
def dqn_reference(x, p):
    def q(a):   # the intentional bf16 rounding of matmul operands
        return a.astype(jnp.bfloat16).astype(jnp.float32)

    def block(h, w, b, g, be):
        y = jnp.dot(q(h), q(w), preferred_element_type=jnp.float32) + b
        mean = jnp.mean(y, axis=0, keepdims=True)
        var = jnp.mean((y - mean) ** 2, axis=0, keepdims=True)
        return jnp.maximum((y - mean) / jnp.sqrt(var + BN_EPS) * g + be, 0.0)

    h = block(x, p["w1"], p["b1"], p["g1"], p["be1"])
    h = block(h, p["w2"], p["b2"], p["g2"], p["be2"])
    h = block(h, p["w3"], p["b3"], p["g3"], p["be3"])
    return jnp.dot(q(h), q(p["w4"]), preferred_element_type=jnp.float32) + p["b4"]


if __name__ == "__main__":
    key = jax.random.PRNGKey(0)
    k_params, k_x = jax.random.split(key)

    params = init_params(k_params)
    kparams = prepare_kernel_params(params)

    batch = 8
    x = jax.random.normal(k_x, (batch, STATE_SIZE), jnp.float32)

    out = dqn_forward(x, kparams)
    out = jax.block_until_ready(out)

    ref = dqn_reference(x, params)
    assert out.shape == (batch, ACTION_SIZE)
    assert jnp.allclose(out, ref, atol=1e-3, rtol=1e-3), "mismatch vs reference"

    print("KERNEL_OK")
</pallas_src>

<mosaic_0001>
module attributes {stable_mosaic.version = 11 : i64} {
  func.func @dqn_kernel(%arg0: memref<8x128xbf16, #tpu.memory_space<vmem>>, %arg1: memref<128x256xbf16, #tpu.memory_space<vmem>>, %arg2: memref<256x256xbf16, #tpu.memory_space<vmem>>, %arg3: memref<256x256xbf16, #tpu.memory_space<vmem>>, %arg4: memref<256x128xbf16, #tpu.memory_space<vmem>>, %arg5: memref<6x256xf32, #tpu.memory_space<vmem>>, %arg6: memref<1x128xf32, #tpu.memory_space<vmem>>, %arg7: memref<8x128xf32, #tpu.memory_space<vmem>>) attributes {dimension_semantics = [], scalar_prefetch = 0 : i64, scratch_operands = 0 : i64, tpu.core_type = #tpu.core_type<tc>} {
    %c0 = arith.constant 0 : index
    %c0_0 = arith.constant 0 : index
    %0 = vector.load %arg5[%c0, %c0_0] : memref<6x256xf32, #tpu.memory_space<vmem>>, vector<6x256xf32>
    %c0_1 = arith.constant 0 : index
    %c0_2 = arith.constant 0 : index
    %1 = vector.load %arg0[%c0_1, %c0_2] : memref<8x128xbf16, #tpu.memory_space<vmem>>, vector<8x128xbf16>
    %2 = vector.extract_strided_slice %0 {offsets = [0, 0], sizes = [1, 256], strides = [1, 1]} : vector<6x256xf32> to vector<1x256xf32>
    %3 = vector.extract_strided_slice %0 {offsets = [1, 0], sizes = [1, 256], strides = [1, 1]} : vector<6x256xf32> to vector<1x256xf32>
    %c0_3 = arith.constant 0 : index
    %c0_4 = arith.constant 0 : index
    %4 = vector.load %arg1[%c0_3, %c0_4] : memref<128x256xbf16, #tpu.memory_space<vmem>>, vector<128x256xbf16>
    %cst = arith.constant dense<0.000000e+00> : vector<8x256xf32>
    %5 = tpu.matmul %1, %4, %cst {dimension_numbers = #tpu.dot_dimension_numbers<[1], [0], [0], [1], [0, 0, 1, 1], [], []>} : vector<8x128xbf16>, vector<128x256xbf16>, vector<8x256xf32> -> vector<8x256xf32>
    %cst_5 = arith.constant dense<0.000000e+00> : vector<256xf32>
    %6 = vector.multi_reduction <add>, %5, %cst_5 [0] : vector<8x256xf32> to vector<256xf32>
    %7 = vector.shape_cast %6 : vector<256xf32> to vector<1x256xf32>
    %cst_6 = arith.constant 8.000000e+00 : f32
    %8 = vector.broadcast %cst_6 : f32 to vector<1x256xf32>
    %9 = arith.divf %7, %8 : vector<1x256xf32>
    %10 = arith.mulf %5, %5 : vector<8x256xf32>
    %cst_7 = arith.constant dense<0.000000e+00> : vector<256xf32>
    %11 = vector.multi_reduction <add>, %10, %cst_7 [0] : vector<8x256xf32> to vector<256xf32>
    %12 = vector.shape_cast %11 : vector<256xf32> to vector<1x256xf32>
    %cst_8 = arith.constant 8.000000e+00 : f32
    %13 = vector.broadcast %cst_8 : f32 to vector<1x256xf32>
    %14 = arith.divf %12, %13 : vector<1x256xf32>
    %15 = arith.mulf %9, %9 : vector<1x256xf32>
    %16 = arith.subf %14, %15 : vector<1x256xf32>
    %cst_9 = arith.constant 9.99999974E-6 : f32
    %17 = vector.broadcast %cst_9 : f32 to vector<1x256xf32>
    %18 = arith.addf %16, %17 : vector<1x256xf32>
    %19 = math.rsqrt %18 : vector<1x256xf32>
    %20 = arith.mulf %2, %19 : vector<1x256xf32>
    %21 = arith.mulf %9, %20 : vector<1x256xf32>
    %22 = arith.subf %3, %21 : vector<1x256xf32>
    %23 = vector.broadcast %20 : vector<1x256xf32> to vector<8x256xf32>
    %24 = arith.mulf %5, %23 : vector<8x256xf32>
    %25 = vector.broadcast %22 : vector<1x256xf32> to vector<8x256xf32>
    %26 = arith.addf %24, %25 : vector<8x256xf32>
    %cst_10 = arith.constant 0.000000e+00 : f32
    %27 = vector.broadcast %cst_10 : f32 to vector<8x256xf32>
    %28 = arith.maximumf %26, %27 : vector<8x256xf32>
    %29 = arith.truncf %28 : vector<8x256xf32> to vector<8x256xbf16>
    %30 = vector.extract_strided_slice %0 {offsets = [2, 0], sizes = [1, 256], strides = [1, 1]} : vector<6x256xf32> to vector<1x256xf32>
    %31 = vector.extract_strided_slice %0 {offsets = [3, 0], sizes = [1, 256], strides = [1, 1]} : vector<6x256xf32> to vector<1x256xf32>
    %c0_11 = arith.constant 0 : index
    %c0_12 = arith.constant 0 : index
    %32 = vector.load %arg2[%c0_11, %c0_12] : memref<256x256xbf16, #tpu.memory_space<vmem>>, vector<256x256xbf16>
    %cst_13 = arith.constant dense<0.000000e+00> : vector<8x256xf32>
    %33 = tpu.matmul %29, %32, %cst_13 {dimension_numbers = #tpu.dot_dimension_numbers<[1], [0], [0], [1], [0, 0, 1, 1], [], []>} : vector<8x256xbf16>, vector<256x256xbf16>, vector<8x256xf32> -> vector<8x256xf32>
    %cst_14 = arith.constant dense<0.000000e+00> : vector<256xf32>
    %34 = vector.multi_reduction <add>, %33, %cst_14 [0] : vector<8x256xf32> to vector<256xf32>
    %35 = vector.shape_cast %34 : vector<256xf32> to vector<1x256xf32>
    %cst_15 = arith.constant 8.000000e+00 : f32
    %36 = vector.broadcast %cst_15 : f32 to vector<1x256xf32>
    %37 = arith.divf %35, %36 : vector<1x256xf32>
    %38 = arith.mulf %33, %33 : vector<8x256xf32>
    %cst_16 = arith.constant dense<0.000000e+00> : vector<256xf32>
    %39 = vector.multi_reduction <add>, %38, %cst_16 [0] : vector<8x256xf32> to vector<256xf32>
    %40 = vector.shape_cast %39 : vector<256xf32> to vector<1x256xf32>
    %cst_17 = arith.constant 8.000000e+00 : f32
    %41 = vector.broadcast %cst_17 : f32 to vector<1x256xf32>
    %42 = arith.divf %40, %41 : vector<1x256xf32>
    %43 = arith.mulf %37, %37 : vector<1x256xf32>
    %44 = arith.subf %42, %43 : vector<1x256xf32>
    %cst_18 = arith.constant 9.99999974E-6 : f32
    %45 = vector.broadcast %cst_18 : f32 to vector<1x256xf32>
    %46 = arith.addf %44, %45 : vector<1x256xf32>
    %47 = math.rsqrt %46 : vector<1x256xf32>
    %48 = arith.mulf %30, %47 : vector<1x256xf32>
    %49 = arith.mulf %37, %48 : vector<1x256xf32>
    %50 = arith.subf %31, %49 : vector<1x256xf32>
    %51 = vector.broadcast %48 : vector<1x256xf32> to vector<8x256xf32>
    %52 = arith.mulf %33, %51 : vector<8x256xf32>
    %53 = vector.broadcast %50 : vector<1x256xf32> to vector<8x256xf32>
    %54 = arith.addf %52, %53 : vector<8x256xf32>
    %cst_19 = arith.constant 0.000000e+00 : f32
    %55 = vector.broadcast %cst_19 : f32 to vector<8x256xf32>
    %56 = arith.maximumf %54, %55 : vector<8x256xf32>
    %57 = arith.truncf %56 : vector<8x256xf32> to vector<8x256xbf16>
    %58 = vector.extract_strided_slice %0 {offsets = [4, 0], sizes = [1, 256], strides = [1, 1]} : vector<6x256xf32> to vector<1x256xf32>
    %59 = vector.extract_strided_slice %0 {offsets = [5, 0], sizes = [1, 256], strides = [1, 1]} : vector<6x256xf32> to vector<1x256xf32>
    %c0_20 = arith.constant 0 : index
    %c0_21 = arith.constant 0 : index
    %60 = vector.load %arg3[%c0_20, %c0_21] : memref<256x256xbf16, #tpu.memory_space<vmem>>, vector<256x256xbf16>
    %cst_22 = arith.constant dense<0.000000e+00> : vector<8x256xf32>
    %61 = tpu.matmul %57, %60, %cst_22 {dimension_numbers = #tpu.dot_dimension_numbers<[1], [0], [0], [1], [0, 0, 1, 1], [], []>} : vector<8x256xbf16>, vector<256x256xbf16>, vector<8x256xf32> -> vector<8x256xf32>
    %cst_23 = arith.constant dense<0.000000e+00> : vector<256xf32>
    %62 = vector.multi_reduction <add>, %61, %cst_23 [0] : vector<8x256xf32> to vector<256xf32>
    %63 = vector.shape_cast %62 : vector<256xf32> to vector<1x256xf32>
    %cst_24 = arith.constant 8.000000e+00 : f32
    %64 = vector.broadcast %cst_24 : f32 to vector<1x256xf32>
    %65 = arith.divf %63, %64 : vector<1x256xf32>
    %66 = arith.mulf %61, %61 : vector<8x256xf32>
    %cst_25 = arith.constant dense<0.000000e+00> : vector<256xf32>
    %67 = vector.multi_reduction <add>, %66, %cst_25 [0] : vector<8x256xf32> to vector<256xf32>
    %68 = vector.shape_cast %67 : vector<256xf32> to vector<1x256xf32>
    %cst_26 = arith.constant 8.000000e+00 : f32
    %69 = vector.broadcast %cst_26 : f32 to vector<1x256xf32>
    %70 = arith.divf %68, %69 : vector<1x256xf32>
    %71 = arith.mulf %65, %65 : vector<1x256xf32>
    %72 = arith.subf %70, %71 : vector<1x256xf32>
    %cst_27 = arith.constant 9.99999974E-6 : f32
    %73 = vector.broadcast %cst_27 : f32 to vector<1x256xf32>
    %74 = arith.addf %72, %73 : vector<1x256xf32>
    %75 = math.rsqrt %74 : vector<1x256xf32>
    %76 = arith.mulf %58, %75 : vector<1x256xf32>
    %77 = arith.mulf %65, %76 : vector<1x256xf32>
    %78 = arith.subf %59, %77 : vector<1x256xf32>
    %79 = vector.broadcast %76 : vector<1x256xf32> to vector<8x256xf32>
    %80 = arith.mulf %61, %79 : vector<8x256xf32>
    %81 = vector.broadcast %78 : vector<1x256xf32> to vector<8x256xf32>
    %82 = arith.addf %80, %81 : vector<8x256xf32>
    %cst_28 = arith.constant 0.000000e+00 : f32
    %83 = vector.broadcast %cst_28 : f32 to vector<8x256xf32>
    %84 = arith.maximumf %82, %83 : vector<8x256xf32>
    %85 = arith.truncf %84 : vector<8x256xf32> to vector<8x256xbf16>
    %c0_29 = arith.constant 0 : index
    %c0_30 = arith.constant 0 : index
    %86 = vector.load %arg4[%c0_29, %c0_30] : memref<256x128xbf16, #tpu.memory_space<vmem>>, vector<256x128xbf16>
    %cst_31 = arith.constant dense<0.000000e+00> : vector<8x128xf32>
    %87 = tpu.matmul %85, %86, %cst_31 {dimension_numbers = #tpu.dot_dimension_numbers<[1], [0], [0], [1], [0, 0, 1, 1], [], []>} : vector<8x256xbf16>, vector<256x128xbf16>, vector<8x128xf32> -> vector<8x128xf32>
    %c0_32 = arith.constant 0 : index
    %c0_33 = arith.constant 0 : index
    %88 = vector.load %arg6[%c0_32, %c0_33] : memref<1x128xf32, #tpu.memory_space<vmem>>, vector<1x128xf32>
    %89 = vector.broadcast %88 : vector<1x128xf32> to vector<8x128xf32>
    %90 = arith.addf %87, %89 : vector<8x128xf32>
    %c0_34 = arith.constant 0 : index
    %c0_35 = arith.constant 0 : index
    %91 = vector.load %arg7[%c0_34, %c0_35] : memref<8x128xf32, #tpu.memory_space<vmem>>, vector<8x128xf32>
    tpu.vector_store %arg7[%c0_34, %c0_35], %90 {strides = array<i32>} : memref<8x128xf32, #tpu.memory_space<vmem>>, vector<8x128xf32>,
    return
  }
}

</mosaic_0001>

<llo_original>
// kernel: tpu_custom_call.1
$region0: #{tpu_custom_call.1}
  #allocation0 [shape = 'u32[]', space=smem, size = 0x4, offset = 0x4, fixed_abs, tag = 'smem constant byte address 0x4 - core index']
  #allocation1 [shape = 'u32[144,128]{1,0:T(1,128)}', space=vmem, size = 0x12000, scoped, tag = 'internal scratch']
  %s0 = inlined_call_operand.hbm [shape: bf16[8,128], index: 0, kind: input, shape index: {}]
  %s1 = inlined_call_operand.hbm [shape: bf16[128,256], index: 1, kind: input, shape index: {}]
  %s2 = inlined_call_operand.hbm [shape: bf16[256,256], index: 2, kind: input, shape index: {}]
  %s3 = inlined_call_operand.hbm [shape: bf16[256,256], index: 3, kind: input, shape index: {}]
  %s4 = inlined_call_operand.hbm [shape: bf16[256,128], index: 4, kind: input, shape index: {}]
  %s5 = inlined_call_operand.vmem [shape: f32[6,256], index: 5, kind: input, shape index: {}]
  %s6 = inlined_call_operand.vmem [shape: f32[1,128], index: 6, kind: input, shape index: {}]
  %s7 = inlined_call_operand.hbm [shape: f32[8,128], index: 7, kind: output, shape index: {}]
  %s8 = sld [smem:[#allocation0]]
  $region58: #{tpu_custom_call.1} parent=0
    _
  %s10 = ssub.s32 1, %s8
  %s11 = scalar_select 0, %s10, %s8
  $region1: #{tpu_custom_call.1} parent=0
    #allocation2 [shape = 'u8[2048]{0}', space=vmem, size = 0x800, scoped, tag = 'input window, operand 0, single buffered']
    #allocation3 [shape = 's32[1]{0}', space=sflag, size = 0x4, scoped, tag = 'scoped memory for tpu_custom_call.1']
    #allocation4 [shape = 's32[1]{0}', space=sflag, size = 0x4, scoped, tag = 'scoped memory for tpu_custom_call.1']
    #allocation5 [shape = 'u8[65536]{0}', space=vmem, size = 0x10000, scoped, tag = 'input window, operand 1, single buffered']
    #allocation6 [shape = 's32[1]{0}', space=sflag, size = 0x4, scoped, tag = 'scoped memory for tpu_custom_call.1']
    #allocation7 [shape = 'u8[131072]{0}', space=vmem, size = 0x20000, scoped, tag = 'input window, operand 2, single buffered']
    #allocation8 [shape = 'u8[131072]{0}', space=vmem, size = 0x20000, scoped, tag = 'input window, operand 3, single buffered']
    #allocation9 [shape = 's32[1]{0}', space=sflag, size = 0x4, scoped, tag = 'scoped memory for tpu_custom_call.1']
    #allocation10 [shape = 'u8[65536]{0}', space=vmem, size = 0x10000, scoped, tag = 'input window, operand 4, single buffered']
    #allocation11 [shape = 'u8[4096]{0}', space=vmem, size = 0x1000, scoped, tag = 'output window, operand 0, single buffered']
    %12 = vsyncpa [#allocation3], 0
    %13 = vsyncpa [#allocation6], 0
    %14 = vsyncpa [#allocation9], 0
    %15 = vsyncpa [#allocation4], 0
    // Predicated region
    $region2: #{tpu_custom_call.1} parent=1 // pred_check
      _
    $region3: #{tpu_custom_call.1} parent=1 // pred_check_branch
      %17 = sbr.rel (0) target = $region5
    $region4: #{tpu_custom_call.1} parent=1 // pred_region
      %s19 = ssub.s32 64, 64
      %20 = vsyncadd [#allocation3], %s19
      %s22 = sshll.u32 [#allocation2], 4
      %s23 = int_to_ptr.vmem [resolvable:$true] %s22
      %25 = dma.hbm_to_vmem [thread:$0]  %s0, 64, %s23, [#allocation3]
    $region5: #{tpu_custom_call.1} parent=1 // pred_fallthru
      _
    // Predicated region
    $region6: #{tpu_custom_call.1} parent=1 // pred_check
      _
    $region7: #{tpu_custom_call.1} parent=1 // pred_check_branch
      %27 = sbr.rel (0) target = $region9
    $region8: #{tpu_custom_call.1} parent=1 // pred_region
      %s29 = ssub.s32 2048, 2048
      %30 = vsyncadd [#allocation6], %s29
      %s31 = sshll.u32 [#allocation5], 4
      %s32 = int_to_ptr.vmem [resolvable:$true] %s31
      %37 = dma.hbm_to_vmem [thread:$0]  %s1, 2048, %s32, [#allocation6], 128, 128, 8
    $region9: #{tpu_custom_call.1} parent=1 // pred_fallthru
      _
    // Predicated region
    $region10: #{tpu_custom_call.1} parent=1 // pred_check
      _
    $region11: #{tpu_custom_call.1} parent=1 // pred_check_branch
      %39 = sbr.rel (0) target = $region13
    $region12: #{tpu_custom_call.1} parent=1 // pred_region
      %s41 = ssub.s32 4096, 4096
      %42 = vsyncadd [#allocation6], %s41
      %s43 = sshll.u32 [#allocation7], 4
      %s44 = int_to_ptr.vmem [resolvable:$true] %s43
      %49 = dma.hbm_to_vmem [thread:$0]  %s2, 4096, %s44, [#allocation6], 128, 128, 8
    $region13: #{tpu_custom_call.1} parent=1 // pred_fallthru
      _
    // Predicated region
    $region14: #{tpu_custom_call.1} parent=1 // pred_check
      _
    $region15: #{tpu_custom_call.1} parent=1 // pred_check_branch
      %51 = sbr.rel (0) target = $region17
    $region16: #{tpu_custom_call.1} parent=1 // pred_region
      %s53 = ssub.s32 4096, 4096
      %54 = vsyncadd [#allocation9], %s53
      %s55 = sshll.u32 [#allocation8], 4
      %s56 = int_to_ptr.vmem [resolvable:$true] %s55
      %61 = dma.hbm_to_vmem [thread:$0]  %s3, 4096, %s56, [#allocation9], 128, 128, 8
    $region17: #{tpu_custom_call.1} parent=1 // pred_fallthru
      _
    // Predicated region
    $region18: #{tpu_custom_call.1} parent=1 // pred_check
      _
    $region19: #{tpu_custom_call.1} parent=1 // pred_check_branch
      %63 = sbr.rel (0) target = $region21
    $region20: #{tpu_custom_call.1} parent=1 // pred_region
      %s65 = ssub.s32 2048, 2048
      %66 = vsyncadd [#allocation9], %s65
      %s67 = sshll.u32 [#allocation10], 4
      %s68 = int_to_ptr.vmem [resolvable:$true] %s67
      %73 = dma.hbm_to_vmem [thread:$0]  %s4, 2048, %s68, [#allocation9], 64, 64, 4
    $region21: #{tpu_custom_call.1} parent=1 // pred_fallthru
      _
    // Predicated region
    $region22: #{tpu_custom_call.1} parent=1 // pred_check
      _
    $region23: #{tpu_custom_call.1} parent=1 // pred_check_branch
      %75 = sbr.rel (0) target = $region25
    $region24: #{tpu_custom_call.1} parent=1 // pred_region
      _
    $region25: #{tpu_custom_call.1} parent=1 // pred_fallthru
      _
    // Predicated region
    $region26: #{tpu_custom_call.1} parent=1 // pred_check
      _
    $region27: #{tpu_custom_call.1} parent=1 // pred_check_branch
      %77 = sbr.rel (0) target = $region29
    $region28: #{tpu_custom_call.1} parent=1 // pred_region
      _
    $region29: #{tpu_custom_call.1} parent=1 // pred_fallthru
      _
    // Predicated region
    $region30: #{tpu_custom_call.1} parent=1 // pred_check
      _
    $region31: #{tpu_custom_call.1} parent=1 // pred_check_branch
      %79 = sbr.rel (0) target = $region33
    $region32: #{tpu_custom_call.1} parent=1 // pred_region
      %80 = dma.done [#allocation3], 64
    $region33: #{tpu_custom_call.1} parent=1 // pred_fallthru
      _
    // Predicated region
    $region34: #{tpu_custom_call.1} parent=1 // pred_check
      _
    $region35: #{tpu_custom_call.1} parent=1 // pred_check_branch
      %82 = sbr.rel (0) target = $region37
    $region36: #{tpu_custom_call.1} parent=1 // pred_region
      %83 = dma.done [#allocation6], 2048
    $region37: #{tpu_custom_call.1} parent=1 // pred_fallthru
      _
    // Predicated region
    $region38: #{tpu_custom_call.1} parent=1 // pred_check
      _
    $region39: #{tpu_custom_call.1} parent=1 // pred_check_branch
      %85 = sbr.rel (0) target = $region41
    $region40: #{tpu_custom_call.1} parent=1 // pred_region
      %86 = dma.done [#allocation6], 4096
    $region41: #{tpu_custom_call.1} parent=1 // pred_fallthru
      _
    // Predicated region
    $region42: #{tpu_custom_call.1} parent=1 // pred_check
      _
    $region43: #{tpu_custom_call.1} parent=1 // pred_check_branch
      %88 = sbr.rel (0) target = $region45
    $region44: #{tpu_custom_call.1} parent=1 // pred_region
      %89 = dma.done [#allocation9], 4096
    $region45: #{tpu_custom_call.1} parent=1 // pred_fallthru
      _
    // Predicated region
    $region46: #{tpu_custom_call.1} parent=1 // pred_check
      _
    $region47: #{tpu_custom_call.1} parent=1 // pred_check_branch
      %91 = sbr.rel (0) target = $region49
    $region48: #{tpu_custom_call.1} parent=1 // pred_region
      %92 = dma.done [#allocation9], 2048
    $region49: #{tpu_custom_call.1} parent=1 // pred_fallthru
      _
    %v94 = vld [vmem:[%s5] sm:$0x3f]
    %v95 = vld [vmem:[%s5 + $0x8] sm:$0x3f]
    %v96 = vld [vmem:[#allocation2] sm:$0xf]
    %v97 = vld [vmem:[#allocation5] sm:$0xff]
    %v98 = vld [vmem:[#allocation5 + $0x8] sm:$0xff]
    %v99 = vld [vmem:[#allocation5 + $0x10] sm:$0xff]
    %v100 = vld [vmem:[#allocation5 + $0x18] sm:$0xff]
    %v101 = vld [vmem:[#allocation5 + $0x20] sm:$0xff]
    %v102 = vld [vmem:[#allocation5 + $0x28] sm:$0xff]
    %v103 = vld [vmem:[#allocation5 + $0x30] sm:$0xff]
    %v104 = vld [vmem:[#allocation5 + $0x38] sm:$0xff]
    %v105 = vld [vmem:[#allocation5 + $0x40] sm:$0xff]
    %v106 = vld [vmem:[#allocation5 + $0x48] sm:$0xff]
    %v107 = vld [vmem:[#allocation5 + $0x50] sm:$0xff]
    %v108 = vld [vmem:[#allocation5 + $0x58] sm:$0xff]
    %v109 = vld [vmem:[#allocation5 + $0x60] sm:$0xff]
    %v110 = vld [vmem:[#allocation5 + $0x68] sm:$0xff]
    %v111 = vld [vmem:[#allocation5 + $0x70] sm:$0xff]
    %v112 = vld [vmem:[#allocation5 + $0x78] sm:$0xff]
    %v129 = vunpack.c.l.b16 %v97
    %v130 = vunpack.c.h.b16 %v97
    %v131 = vunpack.c.l.b16 %v98
    %v132 = vunpack.c.h.b16 %v98
    %v133 = vunpack.c.l.b16 %v99
    %v134 = vunpack.c.h.b16 %v99
    %v135 = vunpack.c.l.b16 %v100
    %v136 = vunpack.c.h.b16 %v100
    %v137 = vunpack.c.l.b16 %v101
    %v138 = vunpack.c.h.b16 %v101
    %v139 = vunpack.c.l.b16 %v102
    %v140 = vunpack.c.h.b16 %v102
    %v141 = vunpack.c.l.b16 %v103
    %v142 = vunpack.c.h.b16 %v103
    %v143 = vunpack.c.l.b16 %v104
    %v144 = vunpack.c.h.b16 %v104
    %v145 = vunpack.c.l.b16 %v105
    %v146 = vunpack.c.h.b16 %v105
    %v147 = vunpack.c.l.b16 %v106
    %v148 = vunpack.c.h.b16 %v106
    %v149 = vunpack.c.l.b16 %v107
    %v150 = vunpack.c.h.b16 %v107
    %v151 = vunpack.c.l.b16 %v108
    %v152 = vunpack.c.h.b16 %v108
    %v153 = vunpack.c.l.b16 %v109
    %v154 = vunpack.c.h.b16 %v109
    %v155 = vunpack.c.l.b16 %v110
    %v156 = vunpack.c.h.b16 %v110
    %v157 = vunpack.c.l.b16 %v111
    %v158 = vunpack.c.h.b16 %v111
    %v159 = vunpack.c.l.b16 %v112
    %v160 = vunpack.c.h.b16 %v112
    %v161 = vpack.c.b16 %v131, %v129
    %v162 = vpack.c.b16 %v132, %v130
    %v163 = vpack.c.b16 %v135, %v133
    %v164 = vpack.c.b16 %v136, %v134
    %v165 = vpack.c.b16 %v139, %v137
    %v166 = vpack.c.b16 %v140, %v138
    %v167 = vpack.c.b16 %v143, %v141
    %v168 = vpack.c.b16 %v144, %v142
    %v169 = vpack.c.b16 %v147, %v145
    %v170 = vpack.c.b16 %v148, %v146
    %v171 = vpack.c.b16 %v151, %v149
    %v172 = vpack.c.b16 %v152, %v150
    %v173 = vpack.c.b16 %v155, %v153
    %v174 = vpack.c.b16 %v156, %v154
    %v175 = vpack.c.b16 %v159, %v157
    %v176 = vpack.c.b16 %v160, %v158
    %193 = vmatprep.subr.bf16.mxu0 %v162
    %194 = vmatpush1.bf16.msra.mxu0 %v161
    %195 = vmatprep.subr.bf16.mxu0 %v164
    %196 = vmatpush1.bf16.msra.mxu0 %v163
    %197 = vmatprep.subr.bf16.mxu0 %v166
    %198 = vmatpush1.bf16.msra.mxu0 %v165
    %199 = vmatprep.subr.bf16.mxu0 %v168
    %200 = vmatpush1.bf16.msra.mxu0 %v167
    %201 = vmatprep.subr.bf16.mxu0 %v170
    %202 = vmatpush1.bf16.msra.mxu0 %v169
    %203 = vmatprep.subr.bf16.mxu0 %v172
    %204 = vmatpush1.bf16.msra.mxu0 %v171
    %205 = vmatprep.subr.bf16.mxu0 %v174
    %206 = vmatpush1.bf16.msra.mxu0 %v173
    %207 = vmatprep.subr.bf16.mxu0 %v176
    %208 = vmatpush1.bf16.msra.mxu0 %v175
    %209 = vmatprep.subr.bf16.mxu0 0
    %210 = vmatpush1.bf16.msra.mxu0 0
    %211 = vmatprep.subr.bf16.mxu0 0
    %212 = vmatpush1.bf16.msra.mxu0 0
    %213 = vmatprep.subr.bf16.mxu0 0
    %214 = vmatpush1.bf16.msra.mxu0 0
    %215 = vmatprep.subr.bf16.mxu0 0
    %216 = vmatpush1.bf16.msra.mxu0 0
    %217 = vmatprep.subr.bf16.mxu0 0
    %218 = vmatpush1.bf16.msra.mxu0 0
    %219 = vmatprep.subr.bf16.mxu0 0
    %220 = vmatpush1.bf16.msra.mxu0 0
    %221 = vmatprep.subr.bf16.mxu0 0
    %222 = vmatpush1.bf16.msra.mxu0 0
    %223 = vmatprep.subr.bf16.mxu0 0
    %224 = vmatpush1.bf16.msra.mxu0 0
    %225 = vmatprep.mubr.bf16.mxu0 0
    %226 = vmatmul.mubr.bf16.gmra.mrb[0].mxu0 %v96
    %v227 = vpop.f32.mrb[0].mxu0
    %v228 = vadd.f32 0.0, %v227
    %v229 = vpop.f32.mrb[0].mxu0
    %v230 = vadd.f32 0.0, %v229
    %v231 = vpop.f32.mrb[0].mxu0
    %v232 = vpop.f32.mrb[0].mxu0
    %233 = vdwg.mxu0
    %v234 = vrot.slane %v228, 4
    %v235 = vadd.f32 %v228, %v234
    %v236 = vrot.slane %v235, 2
    %v237 = vadd.f32 %v235, %v236
    %v238 = vrot.slane %v237, 1
    %v239 = vadd.f32 %v237, %v238
    %v240 = vrot.slane %v230, 4
    %v241 = vadd.f32 %v230, %v240
    %v242 = vrot.slane %v241, 2
    %v243 = vadd.f32 %v241, %v242
    %v244 = vrot.slane %v243, 1
    %v245 = vadd.f32 %v243, %v244
    %v246 = vrcp.pop 8.0
    %v247 = vmul.f32 %v239, %v246
    %v248 = vmul.f32 %v245, %v246
    %v249 = vmul.f32 %v228, %v228
    %v250 = vmul.f32 %v230, %v230
    %v251 = vrot.slane %v249, 4
    %v252 = vadd.f32 %v249, %v251
    %v253 = vrot.slane %v252, 2
    %v254 = vadd.f32 %v252, %v253
    %v255 = vrot.slane %v254, 1
    %v256 = vadd.f32 %v254, %v255
    %v257 = vrot.slane %v250, 4
    %v258 = vadd.f32 %v250, %v257
    %v259 = vrot.slane %v258, 2
    %v260 = vadd.f32 %v258, %v259
    %v261 = vrot.slane %v260, 1
    %v262 = vadd.f32 %v260, %v261
    %v263 = vmul.f32 %v256, %v246
    %v264 = vmul.f32 %v262, %v246
    %v265 = vmul.f32 %v247, %v247
    %v266 = vmul.f32 %v248, %v248
    %v267 = vsub.f32 %v263, %v265
    %v268 = vsub.f32 %v264, %v266
    %v269 = vadd.f32 %v267, 1e-05
    %v270 = vadd.f32 %v268, 1e-05
    %v271 = vrsqrt.pop %v269
    %v272 = vrsqrt.pop %v270
    %v273 = vmul.f32 %v94, %v271
    %v274 = vmul.f32 %v95, %v272
    %v275 = vmul.f32 %v247, %v273
    %v276 = vmul.f32 %v248, %v274
    %v279 = vrot.slane %v275, 7
    %v280 = vrot.slane %v276, 7
    %v283 = vsub.f32 %v94, %v279
    %v284 = vsub.f32 %v95, %v280
    %v285 = vlaneseq
    %v286 = vshrl.u32 %v285, 7
    %v287 = vsub.s32 0, %v286
    %v288 = vrot.slane %v273, %v287
    %v289 = vlaneseq
    %v290 = vshrl.u32 %v289, 7
    %v291 = vsub.s32 0, %v290
    %v292 = vrot.slane %v274, %v291
    %v293 = vmul.f32 %v228, %v288
    %v294 = vmul.f32 %v230, %v292
    %v295 = vlaneseq
    %v296 = vshrl.u32 %v295, 7
    %v297 = vsub.s32 1, %v296
    %v298 = vrot.slane %v283, %v297
    %v299 = vlaneseq
    %v300 = vshrl.u32 %v299, 7
    %v301 = vsub.s32 1, %v300
    %v302 = vrot.slane %v284, %v301
    %v303 = vadd.f32 %v293, %v298
    %v304 = vadd.f32 %v294, %v302
    %v305 = vmax.f32 %v303, 0.0
    %v306 = vmax.f32 %v304, 0.0
    %v307 = vpack.c.bf16 %v305, %v305
    %v308 = vpack.c.bf16 %v306, %v306
    %v309 = vld [vmem:[#allocation7] sm:$0xff]
    %v310 = vld [vmem:[#allocation7 + $0x8] sm:$0xff]
    %v311 = vld [vmem:[#allocation7 + $0x10] sm:$0xff]
    %v312 = vld [vmem:[#allocation7 + $0x18] sm:$0xff]
    %v313 = vld [vmem:[#allocation7 + $0x20] sm:$0xff]
    %v314 = vld [vmem:[#allocation7 + $0x28] sm:$0xff]
    %v315 = vld [vmem:[#allocation7 + $0x30] sm:$0xff]
    %v316 = vld [vmem:[#allocation7 + $0x38] sm:$0xff]
    %v317 = vld [vmem:[#allocation7 + $0x40] sm:$0xff]
    %v318 = vld [vmem:[#allocation7 + $0x48] sm:$0xff]
    %v319 = vld [vmem:[#allocation7 + $0x50] sm:$0xff]
    %v320 = vld [vmem:[#allocation7 + $0x58] sm:$0xff]
    %v321 = vld [vmem:[#allocation7 + $0x60] sm:$0xff]
    %v322 = vld [vmem:[#allocation7 + $0x68] sm:$0xff]
    %v323 = vld [vmem:[#allocation7 + $0x70] sm:$0xff]
    %v324 = vld [vmem:[#allocation7 + $0x78] sm:$0xff]
    %v325 = vld [vmem:[#allocation7 + $0x80] sm:$0xff]
    %v326 = vld [vmem:[#allocation7 + $0x88] sm:$0xff]
    %v327 = vld [vmem:[#allocation7 + $0x90] sm:$0xff]
    %v328 = vld [vmem:[#allocation7 + $0x98] sm:$0xff]
    %v329 = vld [vmem:[#allocation7 + $0xa0] sm:$0xff]
    %v330 = vld [vmem:[#allocation7 + $0xa8] sm:$0xff]
    %v331 = vld [vmem:[#allocation7 + $0xb0] sm:$0xff]
    %v332 = vld [vmem:[#allocation7 + $0xb8] sm:$0xff]
    %v333 = vld [vmem:[#allocation7 + $0xc0] sm:$0xff]
    %v334 = vld [vmem:[#allocation7 + $0xc8] sm:$0xff]
    %v335 = vld [vmem:[#allocation7 + $0xd0] sm:$0xff]
    %v336 = vld [vmem:[#allocation7 + $0xd8] sm:$0xff]
    %v337 = vld [vmem:[#allocation7 + $0xe0] sm:$0xff]
    %v338 = vld [vmem:[#allocation7 + $0xe8] sm:$0xff]
    %v339 = vld [vmem:[#allocation7 + $0xf0] sm:$0xff]
    %v340 = vld [vmem:[#allocation7 + $0xf8] sm:$0xff]
    %v373 = vunpack.c.l.b16 %v309
    %v374 = vunpack.c.h.b16 %v309
    %v375 = vunpack.c.l.b16 %v310
    %v376 = vunpack.c.h.b16 %v310
    %v377 = vunpack.c.l.b16 %v311
    %v378 = vunpack.c.h.b16 %v311
    %v379 = vunpack.c.l.b16 %v312
    %v380 = vunpack.c.h.b16 %v312
    %v381 = vunpack.c.l.b16 %v313
    %v382 = vunpack.c.h.b16 %v313
    %v383 = vunpack.c.l.b16 %v314
    %v384 = vunpack.c.h.b16 %v314
    %v385 = vunpack.c.l.b16 %v315
    %v386 = vunpack.c.h.b16 %v315
    %v387 = vunpack.c.l.b16 %v316
    %v388 = vunpack.c.h.b16 %v316
    %v389 = vunpack.c.l.b16 %v317
    %v390 = vunpack.c.h.b16 %v317
    %v391 = vunpack.c.l.b16 %v318
    %v392 = vunpack.c.h.b16 %v318
    %v393 = vunpack.c.l.b16 %v319
    %v394 = vunpack.c.h.b16 %v319
    %v395 = vunpack.c.l.b16 %v320
    %v396 = vunpack.c.h.b16 %v320
    %v397 = vunpack.c.l.b16 %v321
    %v398 = vunpack.c.h.b16 %v321
    %v399 = vunpack.c.l.b16 %v322
    %v400 = vunpack.c.h.b16 %v322
    %v401 = vunpack.c.l.b16 %v323
    %v402 = vunpack.c.h.b16 %v323
    %v403 = vunpack.c.l.b16 %v324
    %v404 = vunpack.c.h.b16 %v324
    %v405 = vunpack.c.l.b16 %v325
    %v406 = vunpack.c.h.b16 %v325
    %v407 = vunpack.c.l.b16 %v326
    %v408 = vunpack.c.h.b16 %v326
    %v409 = vunpack.c.l.b16 %v327
    %v410 = vunpack.c.h.b16 %v327
    %v411 = vunpack.c.l.b16 %v328
    %v412 = vunpack.c.h.b16 %v328
    %v413 = vunpack.c.l.b16 %v329
    %v414 = vunpack.c.h.b16 %v329
    %v415 = vunpack.c.l.b16 %v330
    %v416 = vunpack.c.h.b16 %v330
    %v417 = vunpack.c.l.b16 %v331
    %v418 = vunpack.c.h.b16 %v331
    %v419 = vunpack.c.l.b16 %v332
    %v420 = vunpack.c.h.b16 %v332
    %v421 = vunpack.c.l.b16 %v333
    %v422 = vunpack.c.h.b16 %v333
    %v423 = vunpack.c.l.b16 %v334
    %v424 = vunpack.c.h.b16 %v334
    %v425 = vunpack.c.l.b16 %v335
    %v426 = vunpack.c.h.b16 %v335
    %v427 = vunpack.c.l.b16 %v336
    %v428 = vunpack.c.h.b16 %v336
    %v429 = vunpack.c.l.b16 %v337
    %v430 = vunpack.c.h.b16 %v337
    %v431 = vunpack.c.l.b16 %v338
    %v432 = vunpack.c.h.b16 %v338
    %v433 = vunpack.c.l.b16 %v339
    %v434 = vunpack.c.h.b16 %v339
    %v435 = vunpack.c.l.b16 %v340
    %v436 = vunpack.c.h.b16 %v340
    %v437 = vpack.c.b16 %v375, %v373
    %v438 = vpack.c.b16 %v376, %v374
    %v439 = vpack.c.b16 %v379, %v377
    %v440 = vpack.c.b16 %v380, %v378
    %v441 = vpack.c.b16 %v383, %v381
    %v442 = vpack.c.b16 %v384, %v382
    %v443 = vpack.c.b16 %v387, %v385
    %v444 = vpack.c.b16 %v388, %v386
    %v445 = vpack.c.b16 %v391, %v389
    %v446 = vpack.c.b16 %v392, %v390
    %v447 = vpack.c.b16 %v395, %v393
    %v448 = vpack.c.b16 %v396, %v394
    %v449 = vpack.c.b16 %v399, %v397
    %v450 = vpack.c.b16 %v400, %v398
    %v451 = vpack.c.b16 %v403, %v401
    %v452 = vpack.c.b16 %v404, %v402
    %v453 = vpack.c.b16 %v407, %v405
    %v454 = vpack.c.b16 %v408, %v406
    %v455 = vpack.c.b16 %v411, %v409
    %v456 = vpack.c.b16 %v412, %v410
    %v457 = vpack.c.b16 %v415, %v413
    %v458 = vpack.c.b16 %v416, %v414
    %v459 = vpack.c.b16 %v419, %v417
    %v460 = vpack.c.b16 %v420, %v418
    %v461 = vpack.c.b16 %v423, %v421
    %v462 = vpack.c.b16 %v424, %v422
    %v463 = vpack.c.b16 %v427, %v425
    %v464 = vpack.c.b16 %v428, %v426
    %v465 = vpack.c.b16 %v431, %v429
    %v466 = vpack.c.b16 %v432, %v430
    %v467 = vpack.c.b16 %v435, %v433
    %v468 = vpack.c.b16 %v436, %v434
    %501 = vmatprep.subr.bf16.mxu0 %v438
    %502 = vmatpush1.bf16.msra.mxu0 %v437
    %503 = vmatprep.subr.bf16.mxu0 %v440
    %504 = vmatpush1.bf16.msra.mxu0 %v439
    %505 = vmatprep.subr.bf16.mxu0 %v442
    %506 = vmatpush1.bf16.msra.mxu0 %v441
    %507 = vmatprep.subr.bf16.mxu0 %v444
    %508 = vmatpush1.bf16.msra.mxu0 %v443
    %509 = vmatprep.subr.bf16.mxu0 %v446
    %510 = vmatpush1.bf16.msra.mxu0 %v445
    %511 = vmatprep.subr.bf16.mxu0 %v448
    %512 = vmatpush1.bf16.msra.mxu0 %v447
    %513 = vmatprep.subr.bf16.mxu0 %v450
    %514 = vmatpush1.bf16.msra.mxu0 %v449
    %515 = vmatprep.subr.bf16.mxu0 %v452
    %516 = vmatpush1.bf16.msra.mxu0 %v451
    %517 = vmatprep.subr.bf16.mxu0 %v454
    %518 = vmatpush1.bf16.msra.mxu0 %v453
    %519 = vmatprep.subr.bf16.mxu0 %v456
    %520 = vmatpush1.bf16.msra.mxu0 %v455
    %521 = vmatprep.subr.bf16.mxu0 %v458
    %522 = vmatpush1.bf16.msra.mxu0 %v457
    %523 = vmatprep.subr.bf16.mxu0 %v460
    %524 = vmatpush1.bf16.msra.mxu0 %v459
    %525 = vmatprep.subr.bf16.mxu0 %v462
    %526 = vmatpush1.bf16.msra.mxu0 %v461
    %527 = vmatprep.subr.bf16.mxu0 %v464
    %528 = vmatpush1.bf16.msra.mxu0 %v463
    %529 = vmatprep.subr.bf16.mxu0 %v466
    %530 = vmatpush1.bf16.msra.mxu0 %v465
    %531 = vmatprep.subr.bf16.mxu0 %v468
    %532 = vmatpush1.bf16.msra.mxu0 %v467
    %533 = vmatprep.mubr.bf16.mxu0 %v308
    %534 = vmatmul.mubr.bf16.gmra.mrb[0].mxu0 %v307
    %v535 = vpop.f32.mrb[0].mxu0
    %v536 = vadd.f32 0.0, %v535
    %v537 = vpop.f32.mrb[0].mxu0
    %v538 = vadd.f32 0.0, %v537
    %v539 = vpop.f32.mrb[0].mxu0
    %v540 = vpop.f32.mrb[0].mxu0
    %541 = vdwg.mxu0
    %v542 = vrot.slane %v536, 4
    %v543 = vadd.f32 %v536, %v542
    %v544 = vrot.slane %v543, 2
    %v545 = vadd.f32 %v543, %v544
    %v546 = vrot.slane %v545, 1
    %v547 = vadd.f32 %v545, %v546
    %v548 = vrot.slane %v538, 4
    %v549 = vadd.f32 %v538, %v548
    %v550 = vrot.slane %v549, 2
    %v551 = vadd.f32 %v549, %v550
    %v552 = vrot.slane %v551, 1
    %v553 = vadd.f32 %v551, %v552
    %v554 = vmul.f32 %v547, %v246
    %v555 = vmul.f32 %v553, %v246
    %v556 = vmul.f32 %v536, %v536
    %v557 = vmul.f32 %v538, %v538
    %v558 = vrot.slane %v556, 4
    %v559 = vadd.f32 %v556, %v558
    %v560 = vrot.slane %v559, 2
    %v561 = vadd.f32 %v559, %v560
    %v562 = vrot.slane %v561, 1
    %v563 = vadd.f32 %v561, %v562
    %v564 = vrot.slane %v557, 4
    %v565 = vadd.f32 %v557, %v564
    %v566 = vrot.slane %v565, 2
    %v567 = vadd.f32 %v565, %v566
    %v568 = vrot.slane %v567, 1
    %v569 = vadd.f32 %v567, %v568
    %v570 = vmul.f32 %v563, %v246
    %v571 = vmul.f32 %v569, %v246
    %v572 = vmul.f32 %v554, %v554
    %v573 = vmul.f32 %v555, %v555
    %v574 = vsub.f32 %v570, %v572
    %v575 = vsub.f32 %v571, %v573
    %v576 = vadd.f32 %v574, 1e-05
    %v577 = vadd.f32 %v575, 1e-05
    %v578 = vrsqrt.pop %v576
    %v579 = vrsqrt.pop %v577
    %v580 = vmul.f32 %v94, %v578
    %v581 = vmul.f32 %v95, %v579
    %v582 = vmul.f32 %v554, %v580
    %v583 = vmul.f32 %v555, %v581
    %v586 = vrot.slane %v582, 7
    %v587 = vrot.slane %v583, 7
    %v590 = vsub.f32 %v94, %v586
    %v591 = vsub.f32 %v95, %v587
    %v592 = vlaneseq
    %v593 = vshrl.u32 %v592, 7
    %v594 = vsub.s32 2, %v593
    %v595 = vrot.slane %v580, %v594
    %v596 = vlaneseq
    %v597 = vshrl.u32 %v596, 7
    %v598 = vsub.s32 2, %v597
    %v599 = vrot.slane %v581, %v598
    %v600 = vmul.f32 %v536, %v595
    %v601 = vmul.f32 %v538, %v599
    %v602 = vlaneseq
    %v603 = vshrl.u32 %v602, 7
    %v604 = vsub.s32 3, %v603
    %v605 = vrot.slane %v590, %v604
    %v606 = vlaneseq
    %v607 = vshrl.u32 %v606, 7
    %v608 = vsub.s32 3, %v607
    %v609 = vrot.slane %v591, %v608
    %v610 = vadd.f32 %v600, %v605
    %v611 = vadd.f32 %v601, %v609
    %v612 = vmax.f32 %v610, 0.0
    %v613 = vmax.f32 %v611, 0.0
    %v614 = vpack.c.bf16 %v612, %v612
    %v615 = vpack.c.bf16 %v613, %v613
    %v616 = vld [vmem:[#allocation8] sm:$0xff]
    %v617 = vld [vmem:[#allocation8 + $0x8] sm:$0xff]
    %v618 = vld [vmem:[#allocation8 + $0x10] sm:$0xff]
    %v619 = vld [vmem:[#allocation8 + $0x18] sm:$0xff]
    %v620 = vld [vmem:[#allocation8 + $0x20] sm:$0xff]
    %v621 = vld [vmem:[#allocation8 + $0x28] sm:$0xff]
    %v622 = vld [vmem:[#allocation8 + $0x30] sm:$0xff]
    %v623 = vld [vmem:[#allocation8 + $0x38] sm:$0xff]
    %v624 = vld [vmem:[#allocation8 + $0x40] sm:$0xff]
    %v625 = vld [vmem:[#allocation8 + $0x48] sm:$0xff]
    %v626 = vld [vmem:[#allocation8 + $0x50] sm:$0xff]
    %v627 = vld [vmem:[#allocation8 + $0x58] sm:$0xff]
    %v628 = vld [vmem:[#allocation8 + $0x60] sm:$0xff]
    %v629 = vld [vmem:[#allocation8 + $0x68] sm:$0xff]
    %v630 = vld [vmem:[#allocation8 + $0x70] sm:$0xff]
    %v631 = vld [vmem:[#allocation8 + $0x78] sm:$0xff]
    %v632 = vld [vmem:[#allocation8 + $0x80] sm:$0xff]
    %v633 = vld [vmem:[#allocation8 + $0x88] sm:$0xff]
    %v634 = vld [vmem:[#allocation8 + $0x90] sm:$0xff]
    %v635 = vld [vmem:[#allocation8 + $0x98] sm:$0xff]
    %v636 = vld [vmem:[#allocation8 + $0xa0] sm:$0xff]
    %v637 = vld [vmem:[#allocation8 + $0xa8] sm:$0xff]
    %v638 = vld [vmem:[#allocation8 + $0xb0] sm:$0xff]
    %v639 = vld [vmem:[#allocation8 + $0xb8] sm:$0xff]
    %v640 = vld [vmem:[#allocation8 + $0xc0] sm:$0xff]
    %v641 = vld [vmem:[#allocation8 + $0xc8] sm:$0xff]
    %v642 = vld [vmem:[#allocation8 + $0xd0] sm:$0xff]
    %v643 = vld [vmem:[#allocation8 + $0xd8] sm:$0xff]
    %v644 = vld [vmem:[#allocation8 + $0xe0] sm:$0xff]
    %v645 = vld [vmem:[#allocation8 + $0xe8] sm:$0xff]
    %v646 = vld [vmem:[#allocation8 + $0xf0] sm:$0xff]
    %v647 = vld [vmem:[#allocation8 + $0xf8] sm:$0xff]
    %v680 = vunpack.c.l.b16 %v616
    %v681 = vunpack.c.h.b16 %v616
    %v682 = vunpack.c.l.b16 %v617
    %v683 = vunpack.c.h.b16 %v617
    %v684 = vunpack.c.l.b16 %v618
    %v685 = vunpack.c.h.b16 %v618
    %v686 = vunpack.c.l.b16 %v619
    %v687 = vunpack.c.h.b16 %v619
    %v688 = vunpack.c.l.b16 %v620
    %v689 = vunpack.c.h.b16 %v620
    %v690 = vunpack.c.l.b16 %v621
    %v691 = vunpack.c.h.b16 %v621
    %v692 = vunpack.c.l.b16 %v622
    %v693 = vunpack.c.h.b16 %v622
    %v694 = vunpack.c.l.b16 %v623
    %v695 = vunpack.c.h.b16 %v623
    %v696 = vunpack.c.l.b16 %v624
    %v697 = vunpack.c.h.b16 %v624
    %v698 = vunpack.c.l.b16 %v625
    %v699 = vunpack.c.h.b16 %v625
    %v700 = vunpack.c.l.b16 %v626
    %v701 = vunpack.c.h.b16 %v626
    %v702 = vunpack.c.l.b16 %v627
    %v703 = vunpack.c.h.b16 %v627
    %v704 = vunpack.c.l.b16 %v628
    %v705 = vunpack.c.h.b16 %v628
    %v706 = vunpack.c.l.b16 %v629
    %v707 = vunpack.c.h.b16 %v629
    %v708 = vunpack.c.l.b16 %v630
    %v709 = vunpack.c.h.b16 %v630
    %v710 = vunpack.c.l.b16 %v631
    %v711 = vunpack.c.h.b16 %v631
    %v712 = vunpack.c.l.b16 %v632
    %v713 = vunpack.c.h.b16 %v632
    %v714 = vunpack.c.l.b16 %v633
    %v715 = vunpack.c.h.b16 %v633
    %v716 = vunpack.c.l.b16 %v634
    %v717 = vunpack.c.h.b16 %v634
    %v718 = vunpack.c.l.b16 %v635
    %v719 = vunpack.c.h.b16 %v635
    %v720 = vunpack.c.l.b16 %v636
    %v721 = vunpack.c.h.b16 %v636
    %v722 = vunpack.c.l.b16 %v637
    %v723 = vunpack.c.h.b16 %v637
    %v724 = vunpack.c.l.b16 %v638
    %v725 = vunpack.c.h.b16 %v638
    %v726 = vunpack.c.l.b16 %v639
    %v727 = vunpack.c.h.b16 %v639
    %v728 = vunpack.c.l.b16 %v640
    %v729 = vunpack.c.h.b16 %v640
    %v730 = vunpack.c.l.b16 %v641
    %v731 = vunpack.c.h.b16 %v641
    %v732 = vunpack.c.l.b16 %v642
    %v733 = vunpack.c.h.b16 %v642
    %v734 = vunpack.c.l.b16 %v643
    %v735 = vunpack.c.h.b16 %v643
    %v736 = vunpack.c.l.b16 %v644
    %v737 = vunpack.c.h.b16 %v644
    %v738 = vunpack.c.l.b16 %v645
    %v739 = vunpack.c.h.b16 %v645
    %v740 = vunpack.c.l.b16 %v646
    %v741 = vunpack.c.h.b16 %v646
    %v742 = vunpack.c.l.b16 %v647
    %v743 = vunpack.c.h.b16 %v647
    %v744 = vpack.c.b16 %v682, %v680
    %v745 = vpack.c.b16 %v683, %v681
    %v746 = vpack.c.b16 %v686, %v684
    %v747 = vpack.c.b16 %v687, %v685
    %v748 = vpack.c.b16 %v690, %v688
    %v749 = vpack.c.b16 %v691, %v689
    %v750 = vpack.c.b16 %v694, %v692
    %v751 = vpack.c.b16 %v695, %v693
    %v752 = vpack.c.b16 %v698, %v696
    %v753 = vpack.c.b16 %v699, %v697
    %v754 = vpack.c.b16 %v702, %v700
    %v755 = vpack.c.b16 %v703, %v701
    %v756 = vpack.c.b16 %v706, %v704
    %v757 = vpack.c.b16 %v707, %v705
    %v758 = vpack.c.b16 %v710, %v708
    %v759 = vpack.c.b16 %v711, %v709
    %v760 = vpack.c.b16 %v714, %v712
    %v761 = vpack.c.b16 %v715, %v713
    %v762 = vpack.c.b16 %v718, %v716
    %v763 = vpack.c.b16 %v719, %v717
    %v764 = vpack.c.b16 %v722, %v720
    %v765 = vpack.c.b16 %v723, %v721
    %v766 = vpack.c.b16 %v726, %v724
    %v767 = vpack.c.b16 %v727, %v725
    %v768 = vpack.c.b16 %v730, %v728
    %v769 = vpack.c.b16 %v731, %v729
    %v770 = vpack.c.b16 %v734, %v732
    %v771 = vpack.c.b16 %v735, %v733
    %v772 = vpack.c.b16 %v738, %v736
    %v773 = vpack.c.b16 %v739, %v737
    %v774 = vpack.c.b16 %v742, %v740
    %v775 = vpack.c.b16 %v743, %v741
    %808 = vmatprep.subr.bf16.mxu0 %v745
    %809 = vmatpush1.bf16.msra.mxu0 %v744
    %810 = vmatprep.subr.bf16.mxu0 %v747
    %811 = vmatpush1.bf16.msra.mxu0 %v746
    %812 = vmatprep.subr.bf16.mxu0 %v749
    %813 = vmatpush1.bf16.msra.mxu0 %v748
    %814 = vmatprep.subr.bf16.mxu0 %v751
    %815 = vmatpush1.bf16.msra.mxu0 %v750
    %816 = vmatprep.subr.bf16.mxu0 %v753
    %817 = vmatpush1.bf16.msra.mxu0 %v752
    %818 = vmatprep.subr.bf16.mxu0 %v755
    %819 = vmatpush1.bf16.msra.mxu0 %v754
    %820 = vmatprep.subr.bf16.mxu0 %v757
    %821 = vmatpush1.bf16.msra.mxu0 %v756
    %822 = vmatprep.subr.bf16.mxu0 %v759
    %823 = vmatpush1.bf16.msra.mxu0 %v758
    %824 = vmatprep.subr.bf16.mxu0 %v761
    %825 = vmatpush1.bf16.msra.mxu0 %v760
    %826 = vmatprep.subr.bf16.mxu0 %v763
    %827 = vmatpush1.bf16.msra.mxu0 %v762
    %828 = vmatprep.subr.bf16.mxu0 %v765
    %829 = vmatpush1.bf16.msra.mxu0 %v764
    %830 = vmatprep.subr.bf16.mxu0 %v767
    %831 = vmatpush1.bf16.msra.mxu0 %v766
    %832 = vmatprep.subr.bf16.mxu0 %v769
    %833 = vmatpush1.bf16.msra.mxu0 %v768
    %834 = vmatprep.subr.bf16.mxu0 %v771
    %835 = vmatpush1.bf16.msra.mxu0 %v770
    %836 = vmatprep.subr.bf16.mxu0 %v773
    %837 = vmatpush1.bf16.msra.mxu0 %v772
    %838 = vmatprep.subr.bf16.mxu0 %v775
    %839 = vmatpush1.bf16.msra.mxu0 %v774
    %840 = vmatprep.mubr.bf16.mxu0 %v615
    %841 = vmatmul.mubr.bf16.gmra.mrb[0].mxu0 %v614
    %v842 = vpop.f32.mrb[0].mxu0
    %v843 = vadd.f32 0.0, %v842
    %v844 = vpop.f32.mrb[0].mxu0
    %v845 = vadd.f32 0.0, %v844
    %v846 = vpop.f32.mrb[0].mxu0
    %v847 = vpop.f32.mrb[0].mxu0
    %848 = vdwg.mxu0
    %v849 = vrot.slane %v843, 4
    %v850 = vadd.f32 %v843, %v849
    %v851 = vrot.slane %v850, 2
    %v852 = vadd.f32 %v850, %v851
    %v853 = vrot.slane %v852, 1
    %v854 = vadd.f32 %v852, %v853
    %v855 = vrot.slane %v845, 4
    %v856 = vadd.f32 %v845, %v855
    %v857 = vrot.slane %v856, 2
    %v858 = vadd.f32 %v856, %v857
    %v859 = vrot.slane %v858, 1
    %v860 = vadd.f32 %v858, %v859
    %v861 = vmul.f32 %v854, %v246
    %v862 = vmul.f32 %v860, %v246
    %v863 = vmul.f32 %v843, %v843
    %v864 = vmul.f32 %v845, %v845
    %v865 = vrot.slane %v863, 4
    %v866 = vadd.f32 %v863, %v865
    %v867 = vrot.slane %v866, 2
    %v868 = vadd.f32 %v866, %v867
    %v869 = vrot.slane %v868, 1
    %v870 = vadd.f32 %v868, %v869
    %v871 = vrot.slane %v864, 4
    %v872 = vadd.f32 %v864, %v871
    %v873 = vrot.slane %v872, 2
    %v874 = vadd.f32 %v872, %v873
    %v875 = vrot.slane %v874, 1
    %v876 = vadd.f32 %v874, %v875
    %v877 = vmul.f32 %v870, %v246
    %v878 = vmul.f32 %v876, %v246
    %v879 = vmul.f32 %v861, %v861
    %v880 = vmul.f32 %v862, %v862
    %v881 = vsub.f32 %v877, %v879
    %v882 = vsub.f32 %v878, %v880
    %v883 = vadd.f32 %v881, 1e-05
    %v884 = vadd.f32 %v882, 1e-05
    %v885 = vrsqrt.pop %v883
    %v886 = vrsqrt.pop %v884
    %v887 = vmul.f32 %v94, %v885
    %v888 = vmul.f32 %v95, %v886
    %v889 = vmul.f32 %v861, %v887
    %v890 = vmul.f32 %v862, %v888
    %v893 = vrot.slane %v889, 7
    %v894 = vrot.slane %v890, 7
    %v897 = vsub.f32 %v94, %v893
    %v898 = vsub.f32 %v95, %v894
    %v899 = vlaneseq
    %v900 = vshrl.u32 %v899, 7
    %v901 = vsub.s32 4, %v900
    %v902 = vrot.slane %v887, %v901
    %v903 = vlaneseq
    %v904 = vshrl.u32 %v903, 7
    %v905 = vsub.s32 4, %v904
    %v906 = vrot.slane %v888, %v905
    %v907 = vmul.f32 %v843, %v902
    %v908 = vmul.f32 %v845, %v906
    %v909 = vlaneseq
    %v910 = vshrl.u32 %v909, 7
    %v911 = vsub.s32 5, %v910
    %v912 = vrot.slane %v897, %v911
    %v913 = vlaneseq
    %v914 = vshrl.u32 %v913, 7
    %v915 = vsub.s32 5, %v914
    %v916 = vrot.slane %v898, %v915
    %v917 = vadd.f32 %v907, %v912
    %v918 = vadd.f32 %v908, %v916
    %v919 = vmax.f32 %v917, 0.0
    %v920 = vmax.f32 %v918, 0.0
    %v921 = vpack.c.bf16 %v919, %v919
    %v922 = vpack.c.bf16 %v920, %v920
    %v923 = vld [vmem:[#allocation10] sm:$0xf]
    %v924 = vld [vmem:[#allocation10 + $0x4] sm:$0xf]
    %v925 = vld [vmem:[#allocation10 + $0x8] sm:$0xf]
    %v926 = vld [vmem:[#allocation10 + $0xc] sm:$0xf]
    %v927 = vld [vmem:[#allocation10 + $0x10] sm:$0xf]
    %v928 = vld [vmem:[#allocation10 + $0x14] sm:$0xf]
    %v929 = vld [vmem:[#allocation10 + $0x18] sm:$0xf]
    %v930 = vld [vmem:[#allocation10 + $0x1c] sm:$0xf]
    %v931 = vld [vmem:[#allocation10 + $0x20] sm:$0xf]
    %v932 = vld [vmem:[#allocation10 + $0x24] sm:$0xf]
    %v933 = vld [vmem:[#allocation10 + $0x28] sm:$0xf]
    %v934 = vld [vmem:[#allocation10 + $0x2c] sm:$0xf]
    %v935 = vld [vmem:[#allocation10 + $0x30] sm:$0xf]
    %v936 = vld [vmem:[#allocation10 + $0x34] sm:$0xf]
    %v937 = vld [vmem:[#allocation10 + $0x38] sm:$0xf]
    %v938 = vld [vmem:[#allocation10 + $0x3c] sm:$0xf]
    %v939 = vld [vmem:[#allocation10 + $0x40] sm:$0xf]
    %v940 = vld [vmem:[#allocation10 + $0x44] sm:$0xf]
    %v941 = vld [vmem:[#allocation10 + $0x48] sm:$0xf]
    %v942 = vld [vmem:[#allocation10 + $0x4c] sm:$0xf]
    %v943 = vld [vmem:[#allocation10 + $0x50] sm:$0xf]
    %v944 = vld [vmem:[#allocation10 + $0x54] sm:$0xf]
    %v945 = vld [vmem:[#allocation10 + $0x58] sm:$0xf]
    %v946 = vld [vmem:[#allocation10 + $0x5c] sm:$0xf]
    %v947 = vld [vmem:[#allocation10 + $0x60] sm:$0xf]
    %v948 = vld [vmem:[#allocation10 + $0x64] sm:$0xf]
    %v949 = vld [vmem:[#allocation10 + $0x68] sm:$0xf]
    %v950 = vld [vmem:[#allocation10 + $0x6c] sm:$0xf]
    %v951 = vld [vmem:[#allocation10 + $0x70] sm:$0xf]
    %v952 = vld [vmem:[#allocation10 + $0x74] sm:$0xf]
    %v953 = vld [vmem:[#allocation10 + $0x78] sm:$0xf]
    %v954 = vld [vmem:[#allocation10 + $0x7c] sm:$0xf]
    %v955 = vld [vmem:[%s6] sm:$0x1]
    %v957 = vlaneseq
    %v958 = vshrl.u32 %v957, 7
    %v959 = vsub.s32 0, %v958
    %v960 = vrot.slane %v955, %v959
    %v994 = vunpack.c.l.b16 %v923
    %v995 = vunpack.c.l.b16 %v924
    %v996 = vunpack.c.l.b16 %v925
    %v997 = vunpack.c.l.b16 %v926
    %v998 = vunpack.c.l.b16 %v927
    %v999 = vunpack.c.l.b16 %v928
    %v1000 = vunpack.c.l.b16 %v929
    %v1001 = vunpack.c.l.b16 %v930
    %v1002 = vunpack.c.l.b16 %v931
    %v1003 = vunpack.c.l.b16 %v932
    %v1004 = vunpack.c.l.b16 %v933
    %v1005 = vunpack.c.l.b16 %v934
    %v1006 = vunpack.c.l.b16 %v935
    %v1007 = vunpack.c.l.b16 %v936
    %v1008 = vunpack.c.l.b16 %v937
    %v1009 = vunpack.c.l.b16 %v938
    %v1010 = vunpack.c.l.b16 %v939
    %v1011 = vunpack.c.l.b16 %v940
    %v1012 = vunpack.c.l.b16 %v941
    %v1013 = vunpack.c.l.b16 %v942
    %v1014 = vunpack.c.l.b16 %v943
    %v1015 = vunpack.c.l.b16 %v944
    %v1016 = vunpack.c.l.b16 %v945
    %v1017 = vunpack.c.l.b16 %v946
    %v1018 = vunpack.c.l.b16 %v947
    %v1019 = vunpack.c.l.b16 %v948
    %v1020 = vunpack.c.l.b16 %v949
    %v1021 = vunpack.c.l.b16 %v950
    %v1022 = vunpack.c.l.b16 %v951
    %v1023 = vunpack.c.l.b16 %v952
    %v1024 = vunpack.c.l.b16 %v953
    %v1025 = vunpack.c.l.b16 %v954
    %v1026 = vpack.c.b16 %v995, %v994
    %v1027 = vpack.c.b16 %v997, %v996
    %v1028 = vpack.c.b16 %v999, %v998
    %v1029 = vpack.c.b16 %v1001, %v1000
    %v1030 = vpack.c.b16 %v1003, %v1002
    %v1031 = vpack.c.b16 %v1005, %v1004
    %v1032 = vpack.c.b16 %v1007, %v1006
    %v1033 = vpack.c.b16 %v1009, %v1008
    %v1034 = vpack.c.b16 %v1011, %v1010
    %v1035 = vpack.c.b16 %v1013, %v1012
    %v1036 = vpack.c.b16 %v1015, %v1014
    %v1037 = vpack.c.b16 %v1017, %v1016
    %v1038 = vpack.c.b16 %v1019, %v1018
    %v1039 = vpack.c.b16 %v1021, %v1020
    %v1040 = vpack.c.b16 %v1023, %v1022
    %v1041 = vpack.c.b16 %v1025, %v1024
    %1058 = vmatprep.subr.bf16.mxu0 0
    %1059 = vmatpush1.bf16.msra.mxu0 %v1026
    %1060 = vmatprep.subr.bf16.mxu0 0
    %1061 = vmatpush1.bf16.msra.mxu0 %v1027
    %1062 = vmatprep.subr.bf16.mxu0 0
    %1063 = vmatpush1.bf16.msra.mxu0 %v1028
    %1064 = vmatprep.subr.bf16.mxu0 0
    %1065 = vmatpush1.bf16.msra.mxu0 %v1029
    %1066 = vmatprep.subr.bf16.mxu0 0
    %1067 = vmatpush1.bf16.msra.mxu0 %v1030
    %1068 = vmatprep.subr.bf16.mxu0 0
    %1069 = vmatpush1.bf16.msra.mxu0 %v1031
    %1070 = vmatprep.subr.bf16.mxu0 0
    %1071 = vmatpush1.bf16.msra.mxu0 %v1032
    %1072 = vmatprep.subr.bf16.mxu0 0
    %1073 = vmatpush1.bf16.msra.mxu0 %v1033
    %1074 = vmatprep.subr.bf16.mxu0 0
    %1075 = vmatpush1.bf16.msra.mxu0 %v1034
    %1076 = vmatprep.subr.bf16.mxu0 0
    %1077 = vmatpush1.bf16.msra.mxu0 %v1035
    %1078 = vmatprep.subr.bf16.mxu0 0
    %1079 = vmatpush1.bf16.msra.mxu0 %v1036
    %1080 = vmatprep.subr.bf16.mxu0 0
    %1081 = vmatpush1.bf16.msra.mxu0 %v1037
    %1082 = vmatprep.subr.bf16.mxu0 0
    %1083 = vmatpush1.bf16.msra.mxu0 %v1038
    %1084 = vmatprep.subr.bf16.mxu0 0
    %1085 = vmatpush1.bf16.msra.mxu0 %v1039
    %1086 = vmatprep.subr.bf16.mxu0 0
    %1087 = vmatpush1.bf16.msra.mxu0 %v1040
    %1088 = vmatprep.subr.bf16.mxu0 0
    %1089 = vmatpush1.bf16.msra.mxu0 %v1041
    %1090 = vmatprep.mubr.bf16.mxu0 %v922
    %1091 = vmatmul.mubr.bf16.gmra.mrb[0].mxu0 %v921
    %v1092 = vpop.f32.mrb[0].mxu0
    %v1093 = vadd.f32 %v960, %v1092
    %v1094 = vpop.f32.mrb[0].mxu0
    %v1095 = vpop.f32.mrb[0].mxu0
    %v1096 = vpop.f32.mrb[0].mxu0
    %1097 = vdwg.mxu0
    %1098 = vst [vmem:[#allocation11] sm:$0xff] %v1093
    // Predicated region
    $region50: #{tpu_custom_call.1} parent=1 // pred_check
      _
    $region51: #{tpu_custom_call.1} parent=1 // pred_check_branch
      %1100 = sbr.rel (0) target = $region53
    $region52: #{tpu_custom_call.1} parent=1 // pred_region
      %s1102 = ssub.s32 128, 128
      %1103 = vsyncadd [#allocation4], %s1102
      %s1105 = sshll.u32 [#allocation11], 4
      %s1106 = int_to_ptr.vmem [resolvable:$true] %s1105
      %1108 = dma.vmem_to_hbm [thread:$0]  %s1106, 128, %s7, [#allocation4]
    $region53: #{tpu_custom_call.1} parent=1 // pred_fallthru
      _
    // Predicated region
    $region54: #{tpu_custom_call.1} parent=1 // pred_check
      _
    $region55: #{tpu_custom_call.1} parent=1 // pred_check_branch
      %1110 = sbr.rel (0) target = $region57
    $region56: #{tpu_custom_call.1} parent=1 // pred_region
      %1111 = dma.done [#allocation4], 128
    $region57: #{tpu_custom_call.1} parent=1 // pred_fallthru
      _
    %1112 = vsyncpa [#allocation3], 1
    %1113 = vsyncpa [#allocation6], 1
    %1114 = vsyncpa [#allocation9], 1
    %1115 = vsyncpa [#allocation4], 1

</llo_original>
